<compile_context>
chip_gen: v6e
topology: v6e:2x2x1
jax: 0.10.0
libtpu: 0.0.40
codegen_flags: <defaults>
</compile_context>

<pallas_src>
import jax
import jax.numpy as jnp
from jax.experimental import pallas as pl
from jax.experimental.pallas import tpu as pltpu


def _elemwise_kernel(x_ref, p_ref, o1_ref, o2_ref, o3_ref):
    # Single VPU pass; p_ref stacks (mytensor, elem_add, elem_multiply).
    x = x_ref[...]
    out1 = x + p_ref[0]
    out2 = out1 + p_ref[1]
    out3 = out2 * p_ref[2]
    o1_ref[...] = out1
    o2_ref[...] = out2
    o3_ref[...] = out3


def _sublane_multiple(dtype):
    # Second-to-last-dim granularity: 8 for 32-bit, 16 for bf16, 32 for int8.
    bits = jnp.dtype(dtype).itemsize * 8
    return max(8, 256 // bits)


def _choose_lanes(n, sublane_mult, cap=1024):
    """Widest power-of-two lane width (multiple of 128, <= cap) dividing n.
    Prefer widths whose resulting row count is sublane-aligned."""
    best_div = None
    best_aligned = None
    lanes = 128
    while lanes <= cap:
        if n % lanes == 0:
            best_div = lanes
            if (n // lanes) % sublane_mult == 0:
                best_aligned = lanes
        lanes *= 2
    return best_aligned if best_aligned is not None else best_div


def _choose_row_tile(rows, lanes, itemsize, sublane_mult):
    """Row tile targeting ~512 rows, budgeted so
    (1 input + 3 packed params + 3 outputs) x 2 pipeline buffers stays well
    under the 32 MiB scoped-VMEM default (safe on v7x's 64 MiB physical)."""
    budget_bytes = 8 * 1024 * 1024
    per_row_bytes = 14 * lanes * itemsize      # 7 logical arrays x 2 buffers
    cap = max(sublane_mult, budget_bytes // per_row_bytes)
    target = min(rows, 512, cap)
    tile = target - (target % sublane_mult)
    return max(sublane_mult, tile)


class MyModelPallas:
    """Pallas port of MyModel. Parameters are packed once at construction."""

    def __init__(self, mytensor, elem_add, elem_multiply):
        self.orig_shape = tuple(mytensor.shape)
        self.dtype = mytensor.dtype
        self.n = int(mytensor.size)
        self.itemsize = jnp.dtype(self.dtype).itemsize
        sub = _sublane_multiple(self.dtype)
        lanes = _choose_lanes(self.n, sub)

        if lanes is None:
            # TODO(synk): n not divisible by 128 -> no lane-dense flattening;
            # fall back to a gridless whole-array call on the original shape
            # (fine for small inputs, may exceed VMEM for very large ones).
            self.lanes = None
            self.rows = None
            self.tile_rows = None
            self.small = True
            self.params = jnp.stack([mytensor, elem_add, elem_multiply], axis=0)
        else:
            self.lanes = lanes
            self.rows = self.n // lanes
            self.tile_rows = _choose_row_tile(self.rows, lanes, self.itemsize, sub)
            self.small = self.rows <= self.tile_rows      # single tile -> gridless
            self.params = jnp.stack(
                [mytensor.reshape(self.rows, lanes),
                 elem_add.reshape(self.rows, lanes),
                 elem_multiply.reshape(self.rows, lanes)],
                axis=0)

    def __call__(self, x):
        dtype = x.dtype
        cost = pl.CostEstimate(
            flops=3 * self.n,
            transcendentals=0,
            bytes_accessed=7 * self.n * self.itemsize)

        if self.small:
            # Gridless whole-array call: minimal launch overhead for tiny shapes.
            if self.lanes is None:
                xf = x
                out_dims = self.orig_shape
            else:
                xf = x.reshape(self.rows, self.lanes)
                out_dims = (self.rows, self.lanes)
            vmem_spec = pl.BlockSpec(memory_space=pltpu.MemorySpace.VMEM)
            out_struct = jax.ShapeDtypeStruct(out_dims, dtype)
            out1, out2, out3 = pl.pallas_call(
                _elemwise_kernel,
                out_shape=(out_struct, out_struct, out_struct),
                in_specs=[vmem_spec, vmem_spec],
                out_specs=(vmem_spec, vmem_spec, vmem_spec),
                cost_estimate=cost,
            )(xf, self.params)
        else:
            # Tiled path for large inputs: ragged row grid, parallel across TCs.
            rows, lanes, tile_rows = self.rows, self.lanes, self.tile_rows
            num_tiles = pl.cdiv(rows, tile_rows)
            x_spec = pl.BlockSpec((tile_rows, lanes), lambda i: (i, 0))
            p_spec = pl.BlockSpec((3, tile_rows, lanes), lambda i: (0, i, 0))
            o_spec = pl.BlockSpec((tile_rows, lanes), lambda i: (i, 0))
            out_struct = jax.ShapeDtypeStruct((rows, lanes), dtype)
            out1, out2, out3 = pl.pallas_call(
                _elemwise_kernel,
                out_shape=(out_struct, out_struct, out_struct),
                grid=(num_tiles,),
                in_specs=[x_spec, p_spec],
                out_specs=(o_spec, o_spec, o_spec),
                compiler_params=pltpu.CompilerParams(
                    dimension_semantics=("parallel",)),
                cost_estimate=cost,
            )(x.reshape(rows, lanes), self.params)

        return (out1.reshape(self.orig_shape),
                out2.reshape(self.orig_shape),
                out3.reshape(self.orig_shape))


if __name__ == "__main__":
    key = jax.random.PRNGKey(0)
    k_x, k_t, k_a, k_m = jax.random.split(key, 4)

    shape = (2, 4, 16, 16)  # NCHW, matches the module's expected input
    x = jax.random.normal(k_x, shape, dtype=jnp.float32)
    mytensor = jax.random.normal(k_t, shape, dtype=jnp.float32)
    elem_add = jax.random.normal(k_a, shape, dtype=jnp.float32)
    elem_multiply = jax.random.normal(k_m, shape, dtype=jnp.float32)

    model = MyModelPallas(mytensor, elem_add, elem_multiply)
    out1, out2, out3 = model(x)
    jax.block_until_ready((out1, out2, out3))

    # correctness check against plain JAX reference
    ref1 = x + mytensor
    ref2 = ref1 + elem_add
    ref3 = ref2 * elem_multiply
    assert jnp.allclose(out1, ref1)
    assert jnp.allclose(out2, ref2)
    assert jnp.allclose(out3, ref3)

    print("KERNEL_OK")
</pallas_src>

<mosaic_0001>
module attributes {stable_mosaic.version = 11 : i64} {
  func.func @_elemwise_kernel(%arg0: memref<8x256xf32, #tpu.memory_space<vmem>>, %arg1: memref<3x8x256xf32, #tpu.memory_space<vmem>>, %arg2: memref<8x256xf32, #tpu.memory_space<vmem>>, %arg3: memref<8x256xf32, #tpu.memory_space<vmem>>, %arg4: memref<8x256xf32, #tpu.memory_space<vmem>>) attributes {dimension_semantics = [], scalar_prefetch = 0 : i64, scratch_operands = 0 : i64, tpu.core_type = #tpu.core_type<tc>} {
    %c0 = arith.constant 0 : index
    %c0_0 = arith.constant 0 : index
    %0 = vector.load %arg0[%c0, %c0_0] : memref<8x256xf32, #tpu.memory_space<vmem>>, vector<8x256xf32>
    %c0_1 = arith.constant 0 : index
    %c0_2 = arith.constant 0 : index
    %c0_3 = arith.constant 0 : index
    %1 = vector.load %arg1[%c0_1, %c0_2, %c0_3] : memref<3x8x256xf32, #tpu.memory_space<vmem>>, vector<1x8x256xf32>
    %2 = vector.shape_cast %1 : vector<1x8x256xf32> to vector<8x256xf32>
    %3 = arith.addf %0, %2 : vector<8x256xf32>
    %c1 = arith.constant 1 : index
    %c0_4 = arith.constant 0 : index
    %c0_5 = arith.constant 0 : index
    %4 = vector.load %arg1[%c1, %c0_4, %c0_5] : memref<3x8x256xf32, #tpu.memory_space<vmem>>, vector<1x8x256xf32>
    %5 = vector.shape_cast %4 : vector<1x8x256xf32> to vector<8x256xf32>
    %6 = arith.addf %3, %5 : vector<8x256xf32>
    %c2 = arith.constant 2 : index
    %c0_6 = arith.constant 0 : index
    %c0_7 = arith.constant 0 : index
    %7 = vector.load %arg1[%c2, %c0_6, %c0_7] : memref<3x8x256xf32, #tpu.memory_space<vmem>>, vector<1x8x256xf32>
    %8 = vector.shape_cast %7 : vector<1x8x256xf32> to vector<8x256xf32>
    %9 = arith.mulf %6, %8 : vector<8x256xf32>
    %c0_8 = arith.constant 0 : index
    %c0_9 = arith.constant 0 : index
    %10 = vector.load %arg2[%c0_8, %c0_9] : memref<8x256xf32, #tpu.memory_space<vmem>>, vector<8x256xf32>
    tpu.vector_store %arg2[%c0_8, %c0_9], %3 {strides = array<i32>} : memref<8x256xf32, #tpu.memory_space<vmem>>, vector<8x256xf32>,
    %c0_10 = arith.constant 0 : index
    %c0_11 = arith.constant 0 : index
    %11 = vector.load %arg3[%c0_10, %c0_11] : memref<8x256xf32, #tpu.memory_space<vmem>>, vector<8x256xf32>
    tpu.vector_store %arg3[%c0_10, %c0_11], %6 {strides = array<i32>} : memref<8x256xf32, #tpu.memory_space<vmem>>, vector<8x256xf32>,
    %c0_12 = arith.constant 0 : index
    %c0_13 = arith.constant 0 : index
    %12 = vector.load %arg4[%c0_12, %c0_13] : memref<8x256xf32, #tpu.memory_space<vmem>>, vector<8x256xf32>
    tpu.vector_store %arg4[%c0_12, %c0_13], %9 {strides = array<i32>} : memref<8x256xf32, #tpu.memory_space<vmem>>, vector<8x256xf32>,
    return
  }
}

</mosaic_0001>

<llo_original>
// kernel: tpu_custom_call.1
$region0: #{tpu_custom_call.1}
  #allocation0 [shape = 'u32[]', space=smem, size = 0x4, offset = 0x4, fixed_abs, tag = 'smem constant byte address 0x4 - core index']
  #allocation1 [shape = 'u32[144,128]{1,0:T(1,128)}', space=vmem, size = 0x12000, scoped, tag = 'internal scratch']
  %s0 = inlined_call_operand.hbm [shape: f32[8,256], index: 0, kind: input, shape index: {}]
  %s1 = inlined_call_operand.hbm [shape: f32[3,8,256], index: 1, kind: input, shape index: {}]
  %s2 = inlined_call_operand.hbm [shape: f32[8,256], index: 2, kind: output, shape index: {0}]
  %s3 = inlined_call_operand.hbm [shape: f32[8,256], index: 3, kind: output, shape index: {1}]
  %s4 = inlined_call_operand.hbm [shape: f32[8,256], index: 4, kind: output, shape index: {2}]
  %5 = xla_tuple %s2, %s3, %s4
  %s6 = sld [smem:[#allocation0]]
  $region42: #{tpu_custom_call.1} parent=0
    _
  %s8 = ssub.s32 1, %s6
  %s9 = scalar_select 0, %s8, %s6
  $region1: #{tpu_custom_call.1} parent=0
    #allocation2 [shape = 'u8[8192]{0}', space=vmem, size = 0x2000, scoped, tag = 'input window, operand 0, single buffered']
    #allocation3 [shape = 's32[1]{0}', space=sflag, size = 0x4, scoped, tag = 'scoped memory for tpu_custom_call.1']
    #allocation4 [shape = 's32[1]{0}', space=sflag, size = 0x4, scoped, tag = 'scoped memory for tpu_custom_call.1']
    #allocation5 [shape = 'u8[24576]{0}', space=vmem, size = 0x6000, scoped, tag = 'input window, operand 1, single buffered']
    #allocation6 [shape = 's32[1]{0}', space=sflag, size = 0x4, scoped, tag = 'scoped memory for tpu_custom_call.1']
    #allocation7 [shape = 'u8[8192]{0}', space=vmem, size = 0x2000, scoped, tag = 'output window, operand 0, single buffered']
    #allocation8 [shape = 'u8[8192]{0}', space=vmem, size = 0x2000, scoped, tag = 'output window, operand 1, single buffered']
    #allocation9 [shape = 's32[1]{0}', space=sflag, size = 0x4, scoped, tag = 'scoped memory for tpu_custom_call.1']
    #allocation10 [shape = 'u8[8192]{0}', space=vmem, size = 0x2000, scoped, tag = 'output window, operand 2, single buffered']
    %10 = vsyncpa [#allocation3], 0
    %11 = vsyncpa [#allocation6], 0
    %12 = vsyncpa [#allocation4], 0
    %13 = vsyncpa [#allocation9], 0
    // Predicated region
    $region2: #{tpu_custom_call.1} parent=1 // pred_check
      _
    $region3: #{tpu_custom_call.1} parent=1 // pred_check_branch
      %15 = sbr.rel (0) target = $region5
    $region4: #{tpu_custom_call.1} parent=1 // pred_region
      %s17 = ssub.s32 256, 256
      %18 = vsyncadd [#allocation3], %s17
      %s20 = sshll.u32 [#allocation2], 4
      %s21 = int_to_ptr.vmem [resolvable:$true] %s20
      %23 = dma.hbm_to_vmem [thread:$0]  %s0, 256, %s21, [#allocation3]
    $region5: #{tpu_custom_call.1} parent=1 // pred_fallthru
      _
    // Predicated region
    $region6: #{tpu_custom_call.1} parent=1 // pred_check
      _
    $region7: #{tpu_custom_call.1} parent=1 // pred_check_branch
      %25 = sbr.rel (0) target = $region9
    $region8: #{tpu_custom_call.1} parent=1 // pred_region
      %s27 = ssub.s32 768, 768
      %28 = vsyncadd [#allocation6], %s27
      %s29 = sshll.u32 [#allocation5], 4
      %s30 = int_to_ptr.vmem [resolvable:$true] %s29
      %35 = dma.hbm_to_vmem [thread:$0]  %s1, 768, %s30, [#allocation6], 256, 256, 16
    $region9: #{tpu_custom_call.1} parent=1 // pred_fallthru
      _
    // Predicated region
    $region10: #{tpu_custom_call.1} parent=1 // pred_check
      _
    $region11: #{tpu_custom_call.1} parent=1 // pred_check_branch
      %37 = sbr.rel (0) target = $region13
    $region12: #{tpu_custom_call.1} parent=1 // pred_region
      %38 = dma.done [#allocation3], 256
    $region13: #{tpu_custom_call.1} parent=1 // pred_fallthru
      _
    // Predicated region
    $region14: #{tpu_custom_call.1} parent=1 // pred_check
      _
    $region15: #{tpu_custom_call.1} parent=1 // pred_check_branch
      %40 = sbr.rel (0) target = $region17
    $region16: #{tpu_custom_call.1} parent=1 // pred_region
      %41 = dma.done [#allocation6], 768
    $region17: #{tpu_custom_call.1} parent=1 // pred_fallthru
      _
    %v42 = vld [vmem:[#allocation2] sm:$0xff]
    %v43 = vld [vmem:[#allocation2 + $0x8] sm:$0xff]
    %v44 = vld [vmem:[#allocation5] sm:$0xff]
    %v45 = vld [vmem:[#allocation5 + $0x8] sm:$0xff]
    %v46 = vadd.f32 %v42, %v44
    %v47 = vadd.f32 %v43, %v45
    %s48 = scalar_lea.vmem [#allocation5], 16
    %v49 = vld [vmem:[%s48] sm:$0xff]
    %v50 = vld [vmem:[%s48 + $0x8] sm:$0xff]
    %v51 = vadd.f32 %v46, %v49
    %v52 = vadd.f32 %v47, %v50
    %s53 = scalar_lea.vmem [#allocation5], 32
    %v54 = vld [vmem:[%s53] sm:$0xff]
    %v55 = vld [vmem:[%s53 + $0x8] sm:$0xff]
    %v56 = vmul.f32 %v51, %v54
    %v57 = vmul.f32 %v52, %v55
    %58 = vst [vmem:[#allocation7] sm:$0xff] %v46
    %59 = vst [vmem:[#allocation7 + $0x8] sm:$0xff] %v47
    %60 = vst [vmem:[#allocation8] sm:$0xff] %v51
    %61 = vst [vmem:[#allocation8 + $0x8] sm:$0xff] %v52
    %62 = vst [vmem:[#allocation10] sm:$0xff] %v56
    %63 = vst [vmem:[#allocation10 + $0x8] sm:$0xff] %v57
    // Predicated region
    $region18: #{tpu_custom_call.1} parent=1 // pred_check
      _
    $region19: #{tpu_custom_call.1} parent=1 // pred_check_branch
      %65 = sbr.rel (0) target = $region21
    $region20: #{tpu_custom_call.1} parent=1 // pred_region
      %s67 = ssub.s32 256, 256
      %68 = vsyncadd [#allocation4], %s67
      %s70 = sshll.u32 [#allocation7], 4
      %s71 = int_to_ptr.vmem [resolvable:$true] %s70
      %73 = dma.vmem_to_hbm [thread:$0]  %s71, 256, %s2, [#allocation4]
    $region21: #{tpu_custom_call.1} parent=1 // pred_fallthru
      _
    // Predicated region
    $region22: #{tpu_custom_call.1} parent=1 // pred_check
      _
    $region23: #{tpu_custom_call.1} parent=1 // pred_check_branch
      %75 = sbr.rel (0) target = $region25
    $region24: #{tpu_custom_call.1} parent=1 // pred_region
      %s77 = ssub.s32 256, 256
      %78 = vsyncadd [#allocation9], %s77
      %s80 = sshll.u32 [#allocation8], 4
      %s81 = int_to_ptr.vmem [resolvable:$true] %s80
      %83 = dma.vmem_to_hbm [thread:$0]  %s81, 256, %s3, [#allocation9]
    $region25: #{tpu_custom_call.1} parent=1 // pred_fallthru
      _
    // Predicated region
    $region26: #{tpu_custom_call.1} parent=1 // pred_check
      _
    $region27: #{tpu_custom_call.1} parent=1 // pred_check_branch
      %85 = sbr.rel (0) target = $region29
    $region28: #{tpu_custom_call.1} parent=1 // pred_region
      %s87 = ssub.s32 256, 256
      %88 = vsyncadd [#allocation9], %s87
      %s90 = sshll.u32 [#allocation10], 4
      %s91 = int_to_ptr.vmem [resolvable:$true] %s90
      %93 = dma.vmem_to_hbm [thread:$0]  %s91, 256, %s4, [#allocation9]
    $region29: #{tpu_custom_call.1} parent=1 // pred_fallthru
      _
    // Predicated region
    $region30: #{tpu_custom_call.1} parent=1 // pred_check
      _
    $region31: #{tpu_custom_call.1} parent=1 // pred_check_branch
      %95 = sbr.rel (0) target = $region33
    $region32: #{tpu_custom_call.1} parent=1 // pred_region
      %96 = dma.done [#allocation4], 256
    $region33: #{tpu_custom_call.1} parent=1 // pred_fallthru
      _
    // Predicated region
    $region34: #{tpu_custom_call.1} parent=1 // pred_check
      _
    $region35: #{tpu_custom_call.1} parent=1 // pred_check_branch
      %98 = sbr.rel (0) target = $region37
    $region36: #{tpu_custom_call.1} parent=1 // pred_region
      %99 = dma.done [#allocation9], 256
    $region37: #{tpu_custom_call.1} parent=1 // pred_fallthru
      _
    // Predicated region
    $region38: #{tpu_custom_call.1} parent=1 // pred_check
      _
    $region39: #{tpu_custom_call.1} parent=1 // pred_check_branch
      %101 = sbr.rel (0) target = $region41
    $region40: #{tpu_custom_call.1} parent=1 // pred_region
      %102 = dma.done [#allocation9], 256
    $region41: #{tpu_custom_call.1} parent=1 // pred_fallthru
      _
    %103 = vsyncpa [#allocation3], 1
    %104 = vsyncpa [#allocation6], 1
    %105 = vsyncpa [#allocation4], 1
    %106 = vsyncpa [#allocation9], 1

</llo_original>
